<compile_context>
chip_gen: v6e
topology: v6e:2x2x1
jax: 0.10.0
libtpu: 0.0.40
codegen_flags: <defaults>
</compile_context>

<pallas_src>
import functools

import jax
import jax.numpy as jnp
from jax.experimental import pallas as pl
from jax.experimental.pallas import tpu as pltpu

LANE = 128  # TPU lane width; output feature dims padded to a multiple of this.


def _round_up(n, m):
    return (n + m - 1) // m * m


def _make_mlp_kernel(n_linear: int):
    """Fused kernel: n_linear Linear layers, LeakyReLU(0.1) between all but
    the last, Dropout as identity (eval mode)."""

    def kernel(*refs):
        x_ref = refs[0]
        o_ref = refs[-1]
        param_refs = refs[1:-1]  # (w0, b0, w1, b1, ...)

        # In-kernel f32 -> bf16 cast of the activation tile (VPU, cheap);
        # avoids a wrapper-side pad/cast HBM round trip.
        h = x_ref[...].astype(jnp.bfloat16)  # (TILE_B, d_in), lane shape ok
        for i in range(n_linear):
            w = param_refs[2 * i][...]        # bf16 (K, dout_pad), VMEM-resident
            b = param_refs[2 * i + 1][...]    # f32  (1, dout_pad)
            # bf16 operands on the MXU, f32 accumulate.
            acc = jnp.dot(h, w, preferred_element_type=jnp.float32) + b
            if i < n_linear - 1:
                # LeakyReLU(0.1) in f32 on the VPU (portable: v5e has no bf16 VPU).
                acc = jnp.where(acc >= 0, acc, 0.1 * acc)
                # Dropout(p) in eval mode == identity.
                h = acc.astype(jnp.bfloat16)  # bf16 operand for next matmul
            else:
                h = acc
        o_ref[...] = h.astype(o_ref.dtype)

    return kernel


def init_mlp_params(key, layer_dims):
    """Parameter init mirroring the PyTorch module structure (f32, unpadded).

    Linear layers (as in the nn.Module):
      for i in range(len(layer_dims)-1): Linear(layer_dims[i], int(layer_dims[i]*0.5))
      final: Linear(int(layer_dims[-2]*0.5), layer_dims[-1])
    Weights stored as (in, out); bias as (1, out).
    """
    dims = []
    dim_hidden = None
    for i in range(len(layer_dims) - 1):
        dim_in = layer_dims[i]
        dim_hidden = int(dim_in * 0.5)
        dims.append((dim_in, dim_hidden))
    dims.append((dim_hidden, layer_dims[-1]))

    params = []
    for (din, dout) in dims:
        key, kw, kb = jax.random.split(key, 3)
        bound = 1.0 / float(din) ** 0.5
        w = jax.random.uniform(kw, (din, dout), jnp.float32, -bound, bound)
        b = jax.random.uniform(kb, (1, dout), jnp.float32, -bound, bound)
        params.append((w, b))
    return params


def pack_params_for_kernel(params):
    """Pack weights for the kernel.

    Output feature dims are zero-padded to 128 lanes (lane-dense activations);
    the FIRST weight keeps K == true d_in (the unpadded x tile feeds it
    directly), subsequent weights pad K to match the previous layer's padded
    output.  Weights -> bf16 (MXU operands), biases -> f32 (epilogue).
    """
    flat = []
    for idx, (w, b) in enumerate(params):
        din, dout = w.shape
        din_p = din if idx == 0 else _round_up(din, LANE)
        dout_p = _round_up(dout, LANE)
        w_p = jnp.zeros((din_p, dout_p), jnp.bfloat16)
        w_p = w_p.at[:din, :dout].set(w.astype(jnp.bfloat16))
        b_p = jnp.zeros((1, dout_p), jnp.float32)
        b_p = b_p.at[:, :dout].set(b)
        flat.extend([w_p, b_p])
    return tuple(flat)


@functools.partial(jax.jit, static_argnames=("out_dim", "tile_b"))
def mlp_forward(x, kernel_params, out_dim, tile_b=256):
    """Fused MLP forward.  `tile_b` is the batch tile; sweep it.  Pick it so
    b_pad // tile_b is a multiple of 2 on v7x (both TensorCores fed)."""
    n_linear = len(kernel_params) // 2
    batch, d_in = x.shape
    d_out_pad = kernel_params[-2].shape[1]

    # Pad batch only (if needed); feature dim stays unpadded, cast happens
    # in-kernel -> no extra activation HBM round trip.
    b_pad = _round_up(batch, tile_b)
    xp = x if b_pad == batch else jnp.pad(x, ((0, b_pad - batch), (0, 0)))

    grid = (b_pad // tile_b,)

    in_specs = [pl.BlockSpec((tile_b, d_in), lambda i: (i, 0))]
    # Weights/biases: full array, constant index map -> fetched once, stay
    # resident in VMEM across all batch tiles.
    in_specs += [pl.BlockSpec(p.shape, lambda i: (0, 0)) for p in kernel_params]
    out_specs = pl.BlockSpec((tile_b, d_out_pad), lambda i: (i, 0))

    # ---- Derived VMEM limit: resident params (x2 default buffering) +
    # double-buffered activation/output tiles, with headroom; capped at 3/4 of
    # the chip's physical VMEM (64 MiB on v7x, 128 MiB on v5e/v6e).
    x_tile_bytes = tile_b * d_in * x.dtype.itemsize
    out_tile_bytes = tile_b * d_out_pad * 4
    param_bytes = sum(int(p.size) * p.dtype.itemsize for p in kernel_params)
    need = 2 * (x_tile_bytes + out_tile_bytes + param_bytes)
    need = int(need * 1.5) + (4 << 20)  # headroom for intermediates / scratch
    try:
        physical_vmem = int(pltpu.get_tpu_info().vmem_capacity_bytes)
    except Exception:
        physical_vmem = 64 << 20  # conservative (v7x per-TC VMEM)
    vmem_limit = max(16 << 20, min(need, physical_vmem * 3 // 4))

    # Advisory cost estimate for XLA scheduling around the custom call.
    flops = 0
    for li in range(n_linear):
        w = kernel_params[2 * li]
        flops += 2 * b_pad * w.shape[0] * w.shape[1]
    bytes_accessed = b_pad * d_in * x.dtype.itemsize
    bytes_accessed += param_bytes
    bytes_accessed += b_pad * d_out_pad * 4
    cost = pl.CostEstimate(flops=int(flops), transcendentals=0,
                           bytes_accessed=int(bytes_accessed))

    out = pl.pallas_call(
        _make_mlp_kernel(n_linear),
        out_shape=jax.ShapeDtypeStruct((b_pad, d_out_pad), jnp.float32),
        grid=grid,
        in_specs=in_specs,
        out_specs=out_specs,
        compiler_params=pltpu.CompilerParams(
            dimension_semantics=("parallel",),  # megacore-shardable on v7x
            vmem_limit_bytes=int(vmem_limit),
        ),
        cost_estimate=cost,
    )(xp, *kernel_params)

    # Slice back to the true batch and out_dim (drops lane padding).
    return out[:batch, :out_dim]


def mlp_reference(x, params):
    """Pure-JAX reference with the same bf16-operand / f32-accumulate numerics."""
    h = x
    n = len(params)
    for i, (w, b) in enumerate(params):
        acc = jnp.dot(h.astype(jnp.bfloat16), w.astype(jnp.bfloat16),
                      preferred_element_type=jnp.float32) + b
        if i < n - 1:
            acc = jnp.where(acc >= 0, acc, 0.1 * acc)
        h = acc
    return h


def mlp_reference_f32(x, params):
    """Full-f32 reference (PyTorch-equivalent numerics) for a sanity check."""
    h = x
    n = len(params)
    for i, (w, b) in enumerate(params):
        h = h @ w + b
        if i < n - 1:
            h = jnp.where(h >= 0, h, 0.1 * h)
    return h


if __name__ == "__main__":
    # layer_dims chosen so the Sequential chains (int(layer_dims[0]*0.5) == layer_dims[1]).
    # Linears: 64 -> 32 -> 16 -> 8 with LeakyReLU(0.1)+Dropout(eval) between them.
    layer_dims = [64, 32, 8]
    batch = 512      # two batch tiles at tile_b=256 -> grid of 2 (even, feeds both v7x TCs)
    tile_b = 256

    key = jax.random.PRNGKey(0)
    kx, kp = jax.random.split(key)
    x = jax.random.normal(kx, (batch, layer_dims[0]), jnp.float32)

    params = init_mlp_params(kp, layer_dims)
    kernel_params = pack_params_for_kernel(params)

    out = mlp_forward(x, kernel_params, layer_dims[-1], tile_b=tile_b)
    out = jax.block_until_ready(out)

    assert out.shape == (batch, layer_dims[-1])

    # Tight check vs a reference with identical bf16-operand numerics.
    ref_bf16 = mlp_reference(x, params)
    assert jnp.allclose(out, ref_bf16, atol=1e-3, rtol=1e-3), \
        "mismatch vs bf16-operand reference"

    # Looser sanity check vs the pure-f32 (PyTorch-equivalent) forward pass.
    ref_f32 = mlp_reference_f32(x, params)
    assert jnp.allclose(out, ref_f32, atol=5e-2, rtol=5e-2), \
        "mismatch vs f32 reference"

    print("KERNEL_OK")
</pallas_src>

<mosaic_0001>
module attributes {stable_mosaic.version = 11 : i64} {
  func.func @kernel(%arg0: i32, %arg1: memref<256x64xf32, #tpu.memory_space<vmem>>, %arg2: memref<64x128xbf16, #tpu.memory_space<vmem>>, %arg3: memref<1x128xf32, #tpu.memory_space<vmem>>, %arg4: memref<128x128xbf16, #tpu.memory_space<vmem>>, %arg5: memref<1x128xf32, #tpu.memory_space<vmem>>, %arg6: memref<128x128xbf16, #tpu.memory_space<vmem>>, %arg7: memref<1x128xf32, #tpu.memory_space<vmem>>, %arg8: memref<256x128xf32, #tpu.memory_space<vmem>>) attributes {dimension_semantics = [#tpu.dimension_semantics<parallel>], iteration_bounds = array<i64: 2>, scalar_prefetch = 0 : i64, scratch_operands = 0 : i64, tpu.core_type = #tpu.core_type<tc>, window_params = [{transform_indices = @transform_0, window_bounds = array<i64: 256, 64>}, {pipeline_mode = #tpu.pipeline_mode<synchronous>, transform_indices = @transform_1, window_bounds = array<i64: 64, 128>}, {pipeline_mode = #tpu.pipeline_mode<synchronous>, transform_indices = @transform_2, window_bounds = array<i64: 1, 128>}, {pipeline_mode = #tpu.pipeline_mode<synchronous>, transform_indices = @transform_3, window_bounds = array<i64: 128, 128>}, {pipeline_mode = #tpu.pipeline_mode<synchronous>, transform_indices = @transform_4, window_bounds = array<i64: 1, 128>}, {pipeline_mode = #tpu.pipeline_mode<synchronous>, transform_indices = @transform_5, window_bounds = array<i64: 128, 128>}, {pipeline_mode = #tpu.pipeline_mode<synchronous>, transform_indices = @transform_6, window_bounds = array<i64: 1, 128>}, {transform_indices = @transform_7, window_bounds = array<i64: 256, 128>}]} {
    %c0 = arith.constant 0 : index
    %c0_0 = arith.constant 0 : index
    %0 = vector.load %arg1[%c0, %c0_0] : memref<256x64xf32, #tpu.memory_space<vmem>>, vector<256x64xf32>
    %1 = arith.truncf %0 : vector<256x64xf32> to vector<256x64xbf16>
    %c0_1 = arith.constant 0 : index
    %c0_2 = arith.constant 0 : index
    %2 = vector.load %arg2[%c0_1, %c0_2] : memref<64x128xbf16, #tpu.memory_space<vmem>>, vector<64x128xbf16>
    %c0_3 = arith.constant 0 : index
    %c0_4 = arith.constant 0 : index
    %3 = vector.load %arg3[%c0_3, %c0_4] : memref<1x128xf32, #tpu.memory_space<vmem>>, vector<1x128xf32>
    %cst = arith.constant dense<0.000000e+00> : vector<256x128xf32>
    %4 = tpu.matmul %1, %2, %cst {dimension_numbers = #tpu.dot_dimension_numbers<[1], [0], [0], [1], [0, 0, 1, 1], [], []>} : vector<256x64xbf16>, vector<64x128xbf16>, vector<256x128xf32> -> vector<256x128xf32>
    %5 = vector.broadcast %3 : vector<1x128xf32> to vector<256x128xf32>
    %6 = arith.addf %4, %5 : vector<256x128xf32>
    %cst_5 = arith.constant 0.000000e+00 : f32
    %7 = vector.broadcast %cst_5 : f32 to vector<256x128xf32>
    %8 = arith.cmpf oge, %6, %7 : vector<256x128xf32>
    %cst_6 = arith.constant 1.000000e-01 : f32
    %9 = vector.broadcast %cst_6 : f32 to vector<256x128xf32>
    %10 = arith.mulf %9, %6 : vector<256x128xf32>
    %11 = arith.select %8, %6, %10 : vector<256x128xi1>, vector<256x128xf32>
    %12 = arith.truncf %11 : vector<256x128xf32> to vector<256x128xbf16>
    %c0_7 = arith.constant 0 : index
    %c0_8 = arith.constant 0 : index
    %13 = vector.load %arg4[%c0_7, %c0_8] : memref<128x128xbf16, #tpu.memory_space<vmem>>, vector<128x128xbf16>
    %c0_9 = arith.constant 0 : index
    %c0_10 = arith.constant 0 : index
    %14 = vector.load %arg5[%c0_9, %c0_10] : memref<1x128xf32, #tpu.memory_space<vmem>>, vector<1x128xf32>
    %cst_11 = arith.constant dense<0.000000e+00> : vector<256x128xf32>
    %15 = tpu.matmul %12, %13, %cst_11 {dimension_numbers = #tpu.dot_dimension_numbers<[1], [0], [0], [1], [0, 0, 1, 1], [], []>} : vector<256x128xbf16>, vector<128x128xbf16>, vector<256x128xf32> -> vector<256x128xf32>
    %16 = vector.broadcast %14 : vector<1x128xf32> to vector<256x128xf32>
    %17 = arith.addf %15, %16 : vector<256x128xf32>
    %cst_12 = arith.constant 0.000000e+00 : f32
    %18 = vector.broadcast %cst_12 : f32 to vector<256x128xf32>
    %19 = arith.cmpf oge, %17, %18 : vector<256x128xf32>
    %cst_13 = arith.constant 1.000000e-01 : f32
    %20 = vector.broadcast %cst_13 : f32 to vector<256x128xf32>
    %21 = arith.mulf %20, %17 : vector<256x128xf32>
    %22 = arith.select %19, %17, %21 : vector<256x128xi1>, vector<256x128xf32>
    %23 = arith.truncf %22 : vector<256x128xf32> to vector<256x128xbf16>
    %c0_14 = arith.constant 0 : index
    %c0_15 = arith.constant 0 : index
    %24 = vector.load %arg6[%c0_14, %c0_15] : memref<128x128xbf16, #tpu.memory_space<vmem>>, vector<128x128xbf16>
    %c0_16 = arith.constant 0 : index
    %c0_17 = arith.constant 0 : index
    %25 = vector.load %arg7[%c0_16, %c0_17] : memref<1x128xf32, #tpu.memory_space<vmem>>, vector<1x128xf32>
    %cst_18 = arith.constant dense<0.000000e+00> : vector<256x128xf32>
    %26 = tpu.matmul %23, %24, %cst_18 {dimension_numbers = #tpu.dot_dimension_numbers<[1], [0], [0], [1], [0, 0, 1, 1], [], []>} : vector<256x128xbf16>, vector<128x128xbf16>, vector<256x128xf32> -> vector<256x128xf32>
    %27 = vector.broadcast %25 : vector<1x128xf32> to vector<256x128xf32>
    %28 = arith.addf %26, %27 : vector<256x128xf32>
    %c0_19 = arith.constant 0 : index
    %c0_20 = arith.constant 0 : index
    %29 = vector.load %arg8[%c0_19, %c0_20] : memref<256x128xf32, #tpu.memory_space<vmem>>, vector<256x128xf32>
    tpu.vector_store %arg8[%c0_19, %c0_20], %28 {strides = array<i32>} : memref<256x128xf32, #tpu.memory_space<vmem>>, vector<256x128xf32>,
    return
  }
  func.func @transform_0(%arg0: i32) -> (i32, i32) {
    %c0_i32 = arith.constant 0 : i32
    %c0_i32_0 = arith.constant 0 : i32
    return %arg0, %c0_i32 : i32, i32
  }
  func.func @transform_1(%arg0: i32) -> (i32, i32) {
    %c0_i32 = arith.constant 0 : i32
    %c0_i32_0 = arith.constant 0 : i32
    %c0_i32_1 = arith.constant 0 : i32
    return %c0_i32, %c0_i32_0 : i32, i32
  }
  func.func @transform_2(%arg0: i32) -> (i32, i32) {
    %c0_i32 = arith.constant 0 : i32
    %c0_i32_0 = arith.constant 0 : i32
    %c0_i32_1 = arith.constant 0 : i32
    return %c0_i32, %c0_i32_0 : i32, i32
  }
  func.func @transform_3(%arg0: i32) -> (i32, i32) {
    %c0_i32 = arith.constant 0 : i32
    %c0_i32_0 = arith.constant 0 : i32
    %c0_i32_1 = arith.constant 0 : i32
    return %c0_i32, %c0_i32_0 : i32, i32
  }
  func.func @transform_4(%arg0: i32) -> (i32, i32) {
    %c0_i32 = arith.constant 0 : i32
    %c0_i32_0 = arith.constant 0 : i32
    %c0_i32_1 = arith.constant 0 : i32
    return %c0_i32, %c0_i32_0 : i32, i32
  }
  func.func @transform_5(%arg0: i32) -> (i32, i32) {
    %c0_i32 = arith.constant 0 : i32
    %c0_i32_0 = arith.constant 0 : i32
    %c0_i32_1 = arith.constant 0 : i32
    return %c0_i32, %c0_i32_0 : i32, i32
  }
  func.func @transform_6(%arg0: i32) -> (i32, i32) {
    %c0_i32 = arith.constant 0 : i32
    %c0_i32_0 = arith.constant 0 : i32
    %c0_i32_1 = arith.constant 0 : i32
    return %c0_i32, %c0_i32_0 : i32, i32
  }
  func.func @transform_7(%arg0: i32) -> (i32, i32) {
    %c0_i32 = arith.constant 0 : i32
    %c0_i32_0 = arith.constant 0 : i32
    return %arg0, %c0_i32 : i32, i32
  }
}

</mosaic_0001>

<llo_original>
// kernel: mlp_forward.1
$region0: #{mlp_forward.1}
  #allocation0 [shape = 'u32[]', space=smem, size = 0x4, offset = 0x4, fixed_abs, tag = 'smem constant byte address 0x4 - core index']
  #allocation1 [shape = 'u32[144,128]{1,0:T(1,128)}', space=vmem, size = 0x12000, scoped, tag = 'internal scratch']
  %s0 = inlined_call_operand.vmem [shape: f32[512,64], index: 0, kind: input, shape index: {}]
  %s1 = inlined_call_operand.vmem [shape: bf16[64,128], index: 1, kind: input, shape index: {}]
  %s2 = inlined_call_operand.vmem [shape: f32[1,128], index: 2, kind: input, shape index: {}]
  %s3 = inlined_call_operand.vmem [shape: bf16[128,128], index: 3, kind: input, shape index: {}]
  %s4 = inlined_call_operand.vmem [shape: f32[1,128], index: 4, kind: input, shape index: {}]
  %s5 = inlined_call_operand.vmem [shape: bf16[128,128], index: 5, kind: input, shape index: {}]
  %s6 = inlined_call_operand.vmem [shape: f32[1,128], index: 6, kind: input, shape index: {}]
  %s7 = inlined_call_operand.vmem [shape: f32[512,128], index: 7, kind: output, shape index: {}]
  %s8 = sld [smem:[#allocation0]]
  $region61: #{mlp_forward.1} parent=0
    _
  %s10 = ssub.s32 1, %s8
  %s11 = scalar_select 0, %s10, %s8
  loop: start=0, step=1, limit=4
  $region2: #{mlp_forward.1} parent=0 // loop_pre_header
    _
  $region3: #{mlp_forward.1} parent=0 // loop_header
    %s13 = sphi 0, %s17
    %p14 = scmp.ge.s32.totalorder %s13, 4
    %s23 = sphi 0, %s25
    %s26 = sphi 0, %s23
    %s27 = sphi 0, %s26
    %s43 = sphi 0, %s27
    %s47 = sphi 0, %s47
    %s49 = sphi 0, %s47
    %s50 = sphi 0, %s49
    %s64 = sphi 0, %s50
    %s68 = sphi 0, %s68
    %s70 = sphi 0, %s68
    %s71 = sphi 0, %s70
    %s85 = sphi 0, %s71
    %s89 = sphi 0, %s89
    %s91 = sphi 0, %s89
    %s92 = sphi 0, %s91
    %s106 = sphi 0, %s92
    %s110 = sphi 0, %s110
    %s112 = sphi 0, %s110
    %s113 = sphi 0, %s112
    %s127 = sphi 0, %s113
    %s131 = sphi 0, %s131
    %s133 = sphi 0, %s131
    %s134 = sphi 0, %s133
    %s148 = sphi 0, %s134
    %s152 = sphi 0, %s152
    %s154 = sphi 0, %s152
    %s155 = sphi 0, %s154
    %s169 = sphi 0, %s155
    %s175 = sphi 0, %s177
    %s178 = sphi 0, %s175
    %s179 = sphi 0, %s178
    %s195 = sphi 0, %s179
  $region4: #{mlp_forward.1} parent=0 // loop_header_branch
    %16 = sbr.rel (%p14) target = $region8
  $region5: #{mlp_forward.1} parent=0 // loop_body
    %s18 = ssub.s32 %s13, 1
    %s19 = ssub.s32 %s13, 2
    %s20 = sadd.s32 %s13, 1
    %s21 = ssub.s32 %s13, %s20
    %p22 = scmp.eq.s32.totalorder %s21, 0
    %s24 = sadd.s32 %s23, 1
    %s25 = scalar_select %p22, %s23, %s24
    %p28 = pneg %p22
    %p29 = scmp.eq.s32.totalorder %s13, 1
    %p30 = por %p28, %p29
    %p31 = scmp.ne.s32.totalorder %s23, %s26
    %p32 = scmp.eq.s32.totalorder %s13, 0
    %p33 = por %p31, %p32
    %p34 = scmp.ne.s32.totalorder %s23, %s26
    %p35 = scmp.eq.s32.totalorder %s18, 1
    %p36 = por %p34, %p35
    %p37 = scmp.ne.s32.totalorder %s26, %s27
    %p38 = scmp.eq.s32.totalorder %s18, 0
    %p39 = por %p37, %p38
    %p40 = scmp.ne.s32.totalorder %s26, %s27
    %p41 = scmp.eq.s32.totalorder %s19, 1
    %p42 = por %p40, %p41
    %p44 = scmp.ne.s32.totalorder %s27, %s43
    %p45 = scmp.eq.s32.totalorder %s19, 0
    %p46 = por %p44, %p45
    %s48 = sadd.s32 %s47, 1
    %p51 = scmp.eq.s32.totalorder %s13, 1
    %p52 = scmp.ne.s32.totalorder %s47, %s49
    %p53 = scmp.eq.s32.totalorder %s13, 0
    %p54 = por %p52, %p53
    %p55 = scmp.ne.s32.totalorder %s47, %s49
    %p56 = scmp.eq.s32.totalorder %s18, 1
    %p57 = por %p55, %p56
    %p58 = scmp.ne.s32.totalorder %s49, %s50
    %p59 = scmp.eq.s32.totalorder %s18, 0
    %p60 = por %p58, %p59
    %p61 = scmp.ne.s32.totalorder %s49, %s50
    %p62 = scmp.eq.s32.totalorder %s19, 1
    %p63 = por %p61, %p62
    %p65 = scmp.ne.s32.totalorder %s50, %s64
    %p66 = scmp.eq.s32.totalorder %s19, 0
    %p67 = por %p65, %p66
    %s69 = sadd.s32 %s68, 1
    %p72 = scmp.eq.s32.totalorder %s13, 1
    %p73 = scmp.ne.s32.totalorder %s68, %s70
    %p74 = scmp.eq.s32.totalorder %s13, 0
    %p75 = por %p73, %p74
    %p76 = scmp.ne.s32.totalorder %s68, %s70
    %p77 = scmp.eq.s32.totalorder %s18, 1
    %p78 = por %p76, %p77
    %p79 = scmp.ne.s32.totalorder %s70, %s71
    %p80 = scmp.eq.s32.totalorder %s18, 0
    %p81 = por %p79, %p80
    %p82 = scmp.ne.s32.totalorder %s70, %s71
    %p83 = scmp.eq.s32.totalorder %s19, 1
    %p84 = por %p82, %p83
    %p86 = scmp.ne.s32.totalorder %s71, %s85
    %p87 = scmp.eq.s32.totalorder %s19, 0
    %p88 = por %p86, %p87
    %s90 = sadd.s32 %s89, 1
    %p93 = scmp.eq.s32.totalorder %s13, 1
    %p94 = scmp.ne.s32.totalorder %s89, %s91
    %p95 = scmp.eq.s32.totalorder %s13, 0
    %p96 = por %p94, %p95
    %p97 = scmp.ne.s32.totalorder %s89, %s91
    %p98 = scmp.eq.s32.totalorder %s18, 1
    %p99 = por %p97, %p98
    %p100 = scmp.ne.s32.totalorder %s91, %s92
    %p101 = scmp.eq.s32.totalorder %s18, 0
    %p102 = por %p100, %p101
    %p103 = scmp.ne.s32.totalorder %s91, %s92
    %p104 = scmp.eq.s32.totalorder %s19, 1
    %p105 = por %p103, %p104
    %p107 = scmp.ne.s32.totalorder %s92, %s106
    %p108 = scmp.eq.s32.totalorder %s19, 0
    %p109 = por %p107, %p108
    %s111 = sadd.s32 %s110, 1
    %p114 = scmp.eq.s32.totalorder %s13, 1
    %p115 = scmp.ne.s32.totalorder %s110, %s112
    %p116 = scmp.eq.s32.totalorder %s13, 0
    %p117 = por %p115, %p116
    %p118 = scmp.ne.s32.totalorder %s110, %s112
    %p119 = scmp.eq.s32.totalorder %s18, 1
    %p120 = por %p118, %p119
    %p121 = scmp.ne.s32.totalorder %s112, %s113
    %p122 = scmp.eq.s32.totalorder %s18, 0
    %p123 = por %p121, %p122
    %p124 = scmp.ne.s32.totalorder %s112, %s113
    %p125 = scmp.eq.s32.totalorder %s19, 1
    %p126 = por %p124, %p125
    %p128 = scmp.ne.s32.totalorder %s113, %s127
    %p129 = scmp.eq.s32.totalorder %s19, 0
    %p130 = por %p128, %p129
    %s132 = sadd.s32 %s131, 1
    %p135 = scmp.eq.s32.totalorder %s13, 1
    %p136 = scmp.ne.s32.totalorder %s131, %s133
    %p137 = scmp.eq.s32.totalorder %s13, 0
    %p138 = por %p136, %p137
    %p139 = scmp.ne.s32.totalorder %s131, %s133
    %p140 = scmp.eq.s32.totalorder %s18, 1
    %p141 = por %p139, %p140
    %p142 = scmp.ne.s32.totalorder %s133, %s134
    %p143 = scmp.eq.s32.totalorder %s18, 0
    %p144 = por %p142, %p143
    %p145 = scmp.ne.s32.totalorder %s133, %s134
    %p146 = scmp.eq.s32.totalorder %s19, 1
    %p147 = por %p145, %p146
    %p149 = scmp.ne.s32.totalorder %s134, %s148
    %p150 = scmp.eq.s32.totalorder %s19, 0
    %p151 = por %p149, %p150
    %s153 = sadd.s32 %s152, 1
    %p156 = scmp.eq.s32.totalorder %s13, 1
    %p157 = scmp.ne.s32.totalorder %s152, %s154
    %p158 = scmp.eq.s32.totalorder %s13, 0
    %p159 = por %p157, %p158
    %p160 = scmp.ne.s32.totalorder %s152, %s154
    %p161 = scmp.eq.s32.totalorder %s18, 1
    %p162 = por %p160, %p161
    %p163 = scmp.ne.s32.totalorder %s154, %s155
    %p164 = scmp.eq.s32.totalorder %s18, 0
    %p165 = por %p163, %p164
    %p166 = scmp.ne.s32.totalorder %s154, %s155
    %p167 = scmp.eq.s32.totalorder %s19, 1
    %p168 = por %p166, %p167
    %p170 = scmp.ne.s32.totalorder %s155, %s169
    %p171 = scmp.eq.s32.totalorder %s19, 0
    %p172 = por %p170, %p171
    %s173 = ssub.s32 %s13, %s20
    %p174 = scmp.eq.s32.totalorder %s173, 0
    %s176 = sadd.s32 %s175, 1
    %s177 = scalar_select %p174, %s175, %s176
    %p180 = pneg %p174
    %p181 = scmp.eq.s32.totalorder %s13, 1
    %p182 = por %p180, %p181
    %p183 = scmp.ne.s32.totalorder %s175, %s178
    %p184 = scmp.eq.s32.totalorder %s13, 0
    %p185 = por %p183, %p184
    %p186 = scmp.ne.s32.totalorder %s175, %s178
    %p187 = scmp.eq.s32.totalorder %s18, 1
    %p188 = por %p186, %p187
    %p189 = scmp.ne.s32.totalorder %s178, %s179
    %p190 = scmp.eq.s32.totalorder %s18, 0
    %p191 = por %p189, %p190
    %p192 = scmp.ne.s32.totalorder %s178, %s179
    %p193 = scmp.eq.s32.totalorder %s19, 1
    %p194 = por %p192, %p193
    %p196 = scmp.ne.s32.totalorder %s179, %s195
    %p197 = scmp.eq.s32.totalorder %s19, 0
    %p198 = por %p196, %p197
    %p199 = scmp.le.s32.totalorder 1, %s13
    %p200 = scmp.lt.s32.totalorder %s13, 3
    %p201 = pnand %p199, %p200
    %p202 = pneg %p201
    // Predicated region
    $region9: #{mlp_forward.1} parent=5 // pred_check
      _
    $region10: #{mlp_forward.1} parent=5 // pred_check_branch
      %204 = sbr.rel (%p201) target = $region12
    $region11: #{mlp_forward.1} parent=5 // pred_region
      %s205 = ssub.s32 %s13, 1
      // Predicated region
      $region13: #{mlp_forward.1} parent=11 // pred_check
        %p206 = pneg %p60
      $region14: #{mlp_forward.1} parent=11 // pred_check_branch
        %208 = sbr.rel (%p206) target = $region16
      $region15: #{mlp_forward.1} parent=11 // pred_region
        _
      $region16: #{mlp_forward.1} parent=11 // pred_fallthru
        _
      // Predicated region
      $region17: #{mlp_forward.1} parent=11 // pred_check
        %p209 = pneg %p81
      $region18: #{mlp_forward.1} parent=11 // pred_check_branch
        %211 = sbr.rel (%p209) target = $region20
      $region19: #{mlp_forward.1} parent=11 // pred_region
        _
      $region20: #{mlp_forward.1} parent=11 // pred_fallthru
        _
      // Predicated region
      $region21: #{mlp_forward.1} parent=11 // pred_check
        %p212 = pneg %p102
      $region22: #{mlp_forward.1} parent=11 // pred_check_branch
        %214 = sbr.rel (%p212) target = $region24
      $region23: #{mlp_forward.1} parent=11 // pred_region
        _
      $region24: #{mlp_forward.1} parent=11 // pred_fallthru
        _
      // Predicated region
      $region25: #{mlp_forward.1} parent=11 // pred_check
        %p215 = pneg %p123
      $region26: #{mlp_forward.1} parent=11 // pred_check_branch
        %217 = sbr.rel (%p215) target = $region28
      $region27: #{mlp_forward.1} parent=11 // pred_region
        _
      $region28: #{mlp_forward.1} parent=11 // pred_fallthru
        _
      // Predicated region
      $region29: #{mlp_forward.1} parent=11 // pred_check
        %p218 = pneg %p144
      $region30: #{mlp_forward.1} parent=11 // pred_check_branch
        %220 = sbr.rel (%p218) target = $region32
      $region31: #{mlp_forward.1} parent=11 // pred_region
        _
      $region32: #{mlp_forward.1} parent=11 // pred_fallthru
        _
      // Predicated region
      $region33: #{mlp_forward.1} parent=11 // pred_check
        %p221 = pneg %p165
      $region34: #{mlp_forward.1} parent=11 // pred_check_branch
        %223 = sbr.rel (%p221) target = $region36
      $region35: #{mlp_forward.1} parent=11 // pred_region
        _
      $region36: #{mlp_forward.1} parent=11 // pred_fallthru
        _
    $region12: #{mlp_forward.1} parent=5 // pred_fallthru
      _
    %p224 = scmp.lt.s32.totalorder %s13, 2
    // Predicated region
    $region37: #{mlp_forward.1} parent=5 // pred_check
      %p225 = pneg %p224
    $region38: #{mlp_forward.1} parent=5 // pred_check_branch
      %227 = sbr.rel (%p225) target = $region40
    $region39: #{mlp_forward.1} parent=5 // pred_region
      // Predicated region
      $region41: #{mlp_forward.1} parent=39 // pred_check
        %p228 = pneg %p33
      $region42: #{mlp_forward.1} parent=39 // pred_check_branch
        %230 = sbr.rel (%p228) target = $region44
      $region43: #{mlp_forward.1} parent=39 // pred_region
        %s231 = smul.u32 32, %s13
        %p232 = scmp.lt.s32.totalorder %s231, 63
        %s233 = scalar_select %p232, %s231, 63
        %s234 = smul.addr %s233, 8
        %s235 = scalar_lea.vmem %s0, %s234
        %s236 = smul.u32 32, %s13
      $region44: #{mlp_forward.1} parent=39 // pred_fallthru
        _
    $region40: #{mlp_forward.1} parent=5 // pred_fallthru
      _
    %p237 = scmp.le.s32.totalorder 1, %s13
    %p238 = scmp.lt.s32.totalorder %s13, 3
    %p239 = pnand %p237, %p238
    %p240 = pneg %p239
    // Predicated region
    $region45: #{mlp_forward.1} parent=5 // pred_check
      _
    $region46: #{mlp_forward.1} parent=5 // pred_check_branch
      %242 = sbr.rel (%p239) target = $region48
    $region47: #{mlp_forward.1} parent=5 // pred_region
      %s243 = ssub.s32 %s13, 1
      %s244 = smul.u32 32, %s18
      %p245 = scmp.lt.s32.totalorder %s244, 63
      %s246 = scalar_select %p245, %s244, 63
      %s247 = smul.addr %s246, 8
      %s248 = scalar_lea.vmem %s0, %s247
      %p249 = pneg %p39
      %p250 = pneg %p36
      %p251 = pneg %p60
      %p252 = pneg %p57
      %p253 = pneg %p81
      %p254 = pneg %p78
      %p255 = pneg %p102
      %p256 = pneg %p99
      %p257 = pneg %p123
      %p258 = pneg %p120
      %p259 = pneg %p144
      %p260 = pneg %p141
      %p261 = pneg %p165
      %p262 = pneg %p162
      %p263 = pneg %p191
      %p264 = pneg %p188
      %s265 = smul.u32 32, %s18
      %p266 = scmp.lt.s32.totalorder %s265, 63
      %s267 = scalar_select %p266, %s265, 63
      %s268 = smul.addr %s267, 8
      %s269 = scalar_lea.vmem %s7, %s268
      %s270 = smul.u32 32, %s18
      %p271 = scmp.lt.s32.totalorder %s270, 63
      %s272 = scalar_select %p271, %s270, 63
      %s273 = smul.addr %s272, 8
      %s274 = scalar_lea.vmem %s0, %s273
      %s275 = smul.u32 32, %s18
      %s276 = smul.u32 32, %s18
      %p277 = scmp.lt.s32.totalorder %s276, 63
      %s278 = scalar_select %p277, %s276, 63
      %s279 = smul.addr %s278, 8
      %s280 = scalar_lea.vmem %s7, %s279
      %s281 = smul.u32 32, %s18
      %v283 = vld [vmem:[%s274] sm:$0xff]
      %v284 = vld [vmem:[%s274 + $0x8] sm:$0xff]
      %v285 = vld [vmem:[%s274 + $0x10] sm:$0xff]
      %v286 = vld [vmem:[%s274 + $0x18] sm:$0xff]
      %v287 = vld [vmem:[%s274 + $0x20] sm:$0xff]
      %v288 = vld [vmem:[%s274 + $0x28] sm:$0xff]
      %v289 = vld [vmem:[%s274 + $0x30] sm:$0xff]
      %v290 = vld [vmem:[%s274 + $0x38] sm:$0xff]
      %v291 = vld [vmem:[%s274 + $0x40] sm:$0xff]
      %v292 = vld [vmem:[%s274 + $0x48] sm:$0xff]
      %v293 = vld [vmem:[%s274 + $0x50] sm:$0xff]
      %v294 = vld [vmem:[%s274 + $0x58] sm:$0xff]
      %v295 = vld [vmem:[%s274 + $0x60] sm:$0xff]
      %v296 = vld [vmem:[%s274 + $0x68] sm:$0xff]
      %v297 = vld [vmem:[%s274 + $0x70] sm:$0xff]
      %v298 = vld [vmem:[%s274 + $0x78] sm:$0xff]
      %v299 = vld [vmem:[%s274 + $0x80] sm:$0xff]
      %v300 = vld [vmem:[%s274 + $0x88] sm:$0xff]
      %v301 = vld [vmem:[%s274 + $0x90] sm:$0xff]
      %v302 = vld [vmem:[%s274 + $0x98] sm:$0xff]
      %v303 = vld [vmem:[%s274 + $0xa0] sm:$0xff]
      %v304 = vld [vmem:[%s274 + $0xa8] sm:$0xff]
      %v305 = vld [vmem:[%s274 + $0xb0] sm:$0xff]
      %v306 = vld [vmem:[%s274 + $0xb8] sm:$0xff]
      %v307 = vld [vmem:[%s274 + $0xc0] sm:$0xff]
      %v308 = vld [vmem:[%s274 + $0xc8] sm:$0xff]
      %v309 = vld [vmem:[%s274 + $0xd0] sm:$0xff]
      %v310 = vld [vmem:[%s274 + $0xd8] sm:$0xff]
      %v311 = vld [vmem:[%s274 + $0xe0] sm:$0xff]
      %v312 = vld [vmem:[%s274 + $0xe8] sm:$0xff]
      %v313 = vld [vmem:[%s274 + $0xf0] sm:$0xff]
      %v314 = vld [vmem:[%s274 + $0xf8] sm:$0xff]
      %v315 = vpack.c.bf16 %v284, %v283
      %v316 = vpack.c.bf16 %v286, %v285
      %v317 = vpack.c.bf16 %v288, %v287
      %v318 = vpack.c.bf16 %v290, %v289
      %v319 = vpack.c.bf16 %v292, %v291
      %v320 = vpack.c.bf16 %v294, %v293
      %v321 = vpack.c.bf16 %v296, %v295
      %v322 = vpack.c.bf16 %v298, %v297
      %v323 = vpack.c.bf16 %v300, %v299
      %v324 = vpack.c.bf16 %v302, %v301
      %v325 = vpack.c.bf16 %v304, %v303
      %v326 = vpack.c.bf16 %v306, %v305
      %v327 = vpack.c.bf16 %v308, %v307
      %v328 = vpack.c.bf16 %v310, %v309
      %v329 = vpack.c.bf16 %v312, %v311
      %v330 = vpack.c.bf16 %v314, %v313
      %v331 = vld [vmem:[%s1] sm:$0xf]
      %v332 = vld [vmem:[%s1 + $0x4] sm:$0xf]
      %v333 = vld [vmem:[%s1 + $0x8] sm:$0xf]
      %v334 = vld [vmem:[%s1 + $0xc] sm:$0xf]
      %v335 = vld [vmem:[%s1 + $0x10] sm:$0xf]
      %v336 = vld [vmem:[%s1 + $0x14] sm:$0xf]
      %v337 = vld [vmem:[%s1 + $0x18] sm:$0xf]
      %v338 = vld [vmem:[%s1 + $0x1c] sm:$0xf]
      %v339 = vld [vmem:[%s2] sm:$0x1]
      %v341 = vlaneseq
      %v342 = vshrl.u32 %v341, 7
      %v343 = vsub.s32 0, %v342
      %v344 = vrot.slane %v339, %v343
      %v354 = vunpack.c.l.b16 %v331
      %v355 = vunpack.c.l.b16 %v332
      %v356 = vunpack.c.l.b16 %v333
      %v357 = vunpack.c.l.b16 %v334
      %v358 = vunpack.c.l.b16 %v335
      %v359 = vunpack.c.l.b16 %v336
      %v360 = vunpack.c.l.b16 %v337
      %v361 = vunpack.c.l.b16 %v338
      %v362 = vpack.c.b16 %v355, %v354
      %v363 = vpack.c.b16 %v357, %v356
      %v364 = vpack.c.b16 %v359, %v358
      %v365 = vpack.c.b16 %v361, %v360
      %vm370 = vcmask 523264
      %v372 = vsel %vm370, %v315, 0
      %v375 = vsel %vm370, %v316, 0
      %v378 = vsel %vm370, %v317, 0
      %v381 = vsel %vm370, %v318, 0
      %v384 = vsel %vm370, %v319, 0
      %v387 = vsel %vm370, %v320, 0
      %v390 = vsel %vm370, %v321, 0
      %v393 = vsel %vm370, %v322, 0
      %v396 = vsel %vm370, %v323, 0
      %v399 = vsel %vm370, %v324, 0
      %v402 = vsel %vm370, %v325, 0
      %v405 = vsel %vm370, %v326, 0
      %v408 = vsel %vm370, %v327, 0
      %v411 = vsel %vm370, %v328, 0
      %v414 = vsel %vm370, %v329, 0
      %v417 = vsel %vm370, %v330, 0
      %419 = vmatprep.subr.bf16.mxu0 0
      %420 = vmatpush1.bf16.msra.mxu0 0
      %421 = vmatprep.subr.bf16.mxu0 0
      %422 = vmatpush1.bf16.msra.mxu0 0
      %423 = vmatprep.subr.bf16.mxu0 0
      %424 = vmatpush1.bf16.msra.mxu0 0
      %425 = vmatprep.subr.bf16.mxu0 0
      %426 = vmatpush1.bf16.msra.mxu0 0
      %427 = vmatprep.subr.bf16.mxu0 0
      %428 = vmatpush1.bf16.msra.mxu0 %v365
      %429 = vmatprep.subr.bf16.mxu0 0
      %430 = vmatpush1.bf16.msra.mxu0 %v364
      %431 = vmatprep.subr.bf16.mxu0 0
      %432 = vmatpush1.bf16.msra.mxu0 %v363
      %433 = vmatprep.subr.bf16.mxu0 0
      %434 = vmatpush1.bf16.msra.mxu0 %v362
      %435 = vmatprep.subr.bf16.mxu0 0
      %436 = vmatpush2.bf16.msra.mxu0 0
      %437 = vmatprep.subr.bf16.mxu0 0
      %438 = vmatpush2.bf16.msra.mxu0 0
      %439 = vmatprep.subr.bf16.mxu0 0
      %440 = vmatpush2.bf16.msra.mxu0 0
      %441 = vmatprep.subr.bf16.mxu0 0
      %442 = vmatpush2.bf16.msra.mxu0 0
      %443 = vmatprep.subr.bf16.mxu0 0
      %444 = vmatpush2.bf16.msra.mxu0 0
      %445 = vmatprep.subr.bf16.mxu0 0
      %446 = vmatpush2.bf16.msra.mxu0 0
      %447 = vmatprep.subr.bf16.mxu0 0
      %448 = vmatpush2.bf16.msra.mxu0 0
      %449 = vmatprep.subr.bf16.mxu0 0
      %450 = vmatpush2.bf16.msra.mxu0 0
      %451 = vmatprep.mubr.bf16.mxu0 0
      %452 = vmatmul.mubr.bf16.gmra.mxu0 %v372
      %v453 = vpop.f32.mrf.mxu0
      %v454 = vadd.f32 %v344, %v453
      %v455 = vpop.f32.mrf.mxu0
      %v456 = vpop.f32.mrf.mxu0
      %v457 = vadd.f32 %v344, %v456
      %v458 = vpop.f32.mrf.mxu0
      %459 = vmatprep.mubr.bf16.mxu0 0
      %460 = vmatmul.mubr.bf16.gmra.mxu0 %v375
      %v461 = vpop.f32.mrf.mxu0
      %v462 = vadd.f32 %v344, %v461
      %v463 = vpop.f32.mrf.mxu0
      %v464 = vpop.f32.mrf.mxu0
      %v465 = vadd.f32 %v344, %v464
      %v466 = vpop.f32.mrf.mxu0
      %467 = vmatprep.mubr.bf16.mxu0 0
      %468 = vmatmul.mubr.bf16.gmra.mxu0 %v378
      %v469 = vpop.f32.mrf.mxu0
      %v470 = vadd.f32 %v344, %v469
      %v471 = vpop.f32.mrf.mxu0
      %v472 = vpop.f32.mrf.mxu0
      %v473 = vadd.f32 %v344, %v472
      %v474 = vpop.f32.mrf.mxu0
      %475 = vmatprep.mubr.bf16.mxu0 0
      %476 = vmatmul.mubr.bf16.gmra.mxu0 %v381
      %v477 = vpop.f32.mrf.mxu0
      %v478 = vadd.f32 %v344, %v477
      %v479 = vpop.f32.mrf.mxu0
      %v480 = vpop.f32.mrf.mxu0
      %v481 = vadd.f32 %v344, %v480
      %v482 = vpop.f32.mrf.mxu0
      %483 = vmatprep.mubr.bf16.mxu0 0
      %484 = vmatmul.mubr.bf16.gmra.mxu0 %v384
      %v485 = vpop.f32.mrf.mxu0
      %v486 = vadd.f32 %v344, %v485
      %v487 = vpop.f32.mrf.mxu0
      %v488 = vpop.f32.mrf.mxu0
      %v489 = vadd.f32 %v344, %v488
      %v490 = vpop.f32.mrf.mxu0
      %491 = vmatprep.mubr.bf16.mxu0 0
      %492 = vmatmul.mubr.bf16.gmra.mxu0 %v387
      %v493 = vpop.f32.mrf.mxu0
      %v494 = vadd.f32 %v344, %v493
      %v495 = vpop.f32.mrf.mxu0
      %v496 = vpop.f32.mrf.mxu0
      %v497 = vadd.f32 %v344, %v496
      %v498 = vpop.f32.mrf.mxu0
      %499 = vmatprep.mubr.bf16.mxu0 0
      %500 = vmatmul.mubr.bf16.gmra.mxu0 %v390
      %v501 = vpop.f32.mrf.mxu0
      %v502 = vadd.f32 %v344, %v501
      %v503 = vpop.f32.mrf.mxu0
      %v504 = vpop.f32.mrf.mxu0
      %v505 = vadd.f32 %v344, %v504
      %v506 = vpop.f32.mrf.mxu0
      %507 = vmatprep.mubr.bf16.mxu0 0
      %508 = vmatmul.mubr.bf16.gmra.mxu0 %v393
      %v509 = vpop.f32.mrf.mxu0
      %v510 = vadd.f32 %v344, %v509
      %v511 = vpop.f32.mrf.mxu0
      %v512 = vpop.f32.mrf.mxu0
      %v513 = vadd.f32 %v344, %v512
      %v514 = vpop.f32.mrf.mxu0
      %515 = vmatprep.mubr.bf16.mxu0 0
      %516 = vmatmul.mubr.bf16.gmra.mxu0 %v396
      %v517 = vpop.f32.mrf.mxu0
      %v518 = vadd.f32 %v344, %v517
      %v519 = vpop.f32.mrf.mxu0
      %v520 = vpop.f32.mrf.mxu0
      %v521 = vadd.f32 %v344, %v520
      %v522 = vpop.f32.mrf.mxu0
      %523 = vmatprep.mubr.bf16.mxu0 0
      %524 = vmatmul.mubr.bf16.gmra.mxu0 %v399
      %v525 = vpop.f32.mrf.mxu0
      %v526 = vadd.f32 %v344, %v525
      %v527 = vpop.f32.mrf.mxu0
      %v528 = vpop.f32.mrf.mxu0
      %v529 = vadd.f32 %v344, %v528
      %v530 = vpop.f32.mrf.mxu0
      %531 = vmatprep.mubr.bf16.mxu0 0
      %532 = vmatmul.mubr.bf16.gmra.mxu0 %v402
      %v533 = vpop.f32.mrf.mxu0
      %v534 = vadd.f32 %v344, %v533
      %v535 = vpop.f32.mrf.mxu0
      %v536 = vpop.f32.mrf.mxu0
      %v537 = vadd.f32 %v344, %v536
      %v538 = vpop.f32.mrf.mxu0
      %539 = vmatprep.mubr.bf16.mxu0 0
      %540 = vmatmul.mubr.bf16.gmra.mxu0 %v405
      %v541 = vpop.f32.mrf.mxu0
      %v542 = vadd.f32 %v344, %v541
      %v543 = vpop.f32.mrf.mxu0
      %v544 = vpop.f32.mrf.mxu0
      %v545 = vadd.f32 %v344, %v544
      %v546 = vpop.f32.mrf.mxu0
      %547 = vmatprep.mubr.bf16.mxu0 0
      %548 = vmatmul.mubr.bf16.gmra.mxu0 %v408
      %v549 = vpop.f32.mrf.mxu0
      %v550 = vadd.f32 %v344, %v549
      %v551 = vpop.f32.mrf.mxu0
      %v552 = vpop.f32.mrf.mxu0
      %v553 = vadd.f32 %v344, %v552
      %v554 = vpop.f32.mrf.mxu0
      %555 = vmatprep.mubr.bf16.mxu0 0
      %556 = vmatmul.mubr.bf16.gmra.mxu0 %v411
      %v557 = vpop.f32.mrf.mxu0
      %v558 = vadd.f32 %v344, %v557
      %v559 = vpop.f32.mrf.mxu0
      %v560 = vpop.f32.mrf.mxu0
      %v561 = vadd.f32 %v344, %v560
      %v562 = vpop.f32.mrf.mxu0
      %563 = vmatprep.mubr.bf16.mxu0 0
      %564 = vmatmul.mubr.bf16.gmra.mxu0 %v414
      %v565 = vpop.f32.mrf.mxu0
      %v566 = vadd.f32 %v344, %v565
      %v567 = vpop.f32.mrf.mxu0
      %v568 = vpop.f32.mrf.mxu0
      %v569 = vadd.f32 %v344, %v568
      %v570 = vpop.f32.mrf.mxu0
      %571 = vmatprep.mubr.bf16.mxu0 0
      %572 = vmatmul.mubr.bf16.gmra.mxu0 %v417
      %v573 = vpop.f32.mrf.mxu0
      %v574 = vadd.f32 %v344, %v573
      %v575 = vpop.f32.mrf.mxu0
      %v576 = vpop.f32.mrf.mxu0
      %v577 = vadd.f32 %v344, %v576
      %v578 = vpop.f32.mrf.mxu0
      %579 = vdwg.mxu0
      %vm580 = vcmp.ge.f32.partialorder %v454, 0.0
      %vm581 = vcmp.ge.f32.partialorder %v457, 0.0
      %vm582 = vcmp.ge.f32.partialorder %v462, 0.0
      %vm583 = vcmp.ge.f32.partialorder %v465, 0.0
      %vm584 = vcmp.ge.f32.partialorder %v470, 0.0
      %vm585 = vcmp.ge.f32.partialorder %v473, 0.0
      %vm586 = vcmp.ge.f32.partialorder %v478, 0.0
      %vm587 = vcmp.ge.f32.partialorder %v481, 0.0
      %vm588 = vcmp.ge.f32.partialorder %v486, 0.0
      %vm589 = vcmp.ge.f32.partialorder %v489, 0.0
      %vm590 = vcmp.ge.f32.partialorder %v494, 0.0
      %vm591 = vcmp.ge.f32.partialorder %v497, 0.0
      %vm592 = vcmp.ge.f32.partialorder %v502, 0.0
      %vm593 = vcmp.ge.f32.partialorder %v505, 0.0
      %vm594 = vcmp.ge.f32.partialorder %v510, 0.0
      %vm595 = vcmp.ge.f32.partialorder %v513, 0.0
      %vm596 = vcmp.ge.f32.partialorder %v518, 0.0
      %vm597 = vcmp.ge.f32.partialorder %v521, 0.0
      %vm598 = vcmp.ge.f32.partialorder %v526, 0.0
      %vm599 = vcmp.ge.f32.partialorder %v529, 0.0
      %vm600 = vcmp.ge.f32.partialorder %v534, 0.0
      %vm601 = vcmp.ge.f32.partialorder %v537, 0.0
      %vm602 = vcmp.ge.f32.partialorder %v542, 0.0
      %vm603 = vcmp.ge.f32.partialorder %v545, 0.0
      %vm604 = vcmp.ge.f32.partialorder %v550, 0.0
      %vm605 = vcmp.ge.f32.partialorder %v553, 0.0
      %vm606 = vcmp.ge.f32.partialorder %v558, 0.0
      %vm607 = vcmp.ge.f32.partialorder %v561, 0.0
      %vm608 = vcmp.ge.f32.partialorder %v566, 0.0
      %vm609 = vcmp.ge.f32.partialorder %v569, 0.0
      %vm610 = vcmp.ge.f32.partialorder %v574, 0.0
      %vm611 = vcmp.ge.f32.partialorder %v577, 0.0
      %v612 = vmul.f32 %v454, 0.1
      %v613 = vmul.f32 %v457, 0.1
      %v614 = vmul.f32 %v462, 0.1
      %v615 = vmul.f32 %v465, 0.1
      %v616 = vmul.f32 %v470, 0.1
      %v617 = vmul.f32 %v473, 0.1
      %v618 = vmul.f32 %v478, 0.1
      %v619 = vmul.f32 %v481, 0.1
      %v620 = vmul.f32 %v486, 0.1
      %v621 = vmul.f32 %v489, 0.1
      %v622 = vmul.f32 %v494, 0.1
      %v623 = vmul.f32 %v497, 0.1
      %v624 = vmul.f32 %v502, 0.1
      %v625 = vmul.f32 %v505, 0.1
      %v626 = vmul.f32 %v510, 0.1
      %v627 = vmul.f32 %v513, 0.1
      %v628 = vmul.f32 %v518, 0.1
      %v629 = vmul.f32 %v521, 0.1
      %v630 = vmul.f32 %v526, 0.1
      %v631 = vmul.f32 %v529, 0.1
      %v632 = vmul.f32 %v534, 0.1
      %v633 = vmul.f32 %v537, 0.1
      %v634 = vmul.f32 %v542, 0.1
      %v635 = vmul.f32 %v545, 0.1
      %v636 = vmul.f32 %v550, 0.1
      %v637 = vmul.f32 %v553, 0.1
      %v638 = vmul.f32 %v558, 0.1
      %v639 = vmul.f32 %v561, 0.1
      %v640 = vmul.f32 %v566, 0.1
      %v641 = vmul.f32 %v569, 0.1
      %v642 = vmul.f32 %v574, 0.1
      %v643 = vmul.f32 %v577, 0.1
      %v644 = vsel %vm580, %v454, %v612
      %v645 = vsel %vm581, %v457, %v613
      %v646 = vsel %vm582, %v462, %v614
      %v647 = vsel %vm583, %v465, %v615
      %v648 = vsel %vm584, %v470, %v616
      %v649 = vsel %vm585, %v473, %v617
      %v650 = vsel %vm586, %v478, %v618
      %v651 = vsel %vm587, %v481, %v619
      %v652 = vsel %vm588, %v486, %v620
      %v653 = vsel %vm589, %v489, %v621
      %v654 = vsel %vm590, %v494, %v622
      %v655 = vsel %vm591, %v497, %v623
      %v656 = vsel %vm592, %v502, %v624
      %v657 = vsel %vm593, %v505, %v625
      %v658 = vsel %vm594, %v510, %v626
      %v659 = vsel %vm595, %v513, %v627
      %v660 = vsel %vm596, %v518, %v628
      %v661 = vsel %vm597, %v521, %v629
      %v662 = vsel %vm598, %v526, %v630
      %v663 = vsel %vm599, %v529, %v631
      %v664 = vsel %vm600, %v534, %v632
      %v665 = vsel %vm601, %v537, %v633
      %v666 = vsel %vm602, %v542, %v634
      %v667 = vsel %vm603, %v545, %v635
      %v668 = vsel %vm604, %v550, %v636
      %v669 = vsel %vm605, %v553, %v637
      %v670 = vsel %vm606, %v558, %v638
      %v671 = vsel %vm607, %v561, %v639
      %v672 = vsel %vm608, %v566, %v640
      %v673 = vsel %vm609, %v569, %v641
      %v674 = vsel %vm610, %v574, %v642
      %v675 = vsel %vm611, %v577, %v643
      %v676 = vpack.c.bf16 %v645, %v644
      %v677 = vpack.c.bf16 %v647, %v646
      %v678 = vpack.c.bf16 %v649, %v648
      %v679 = vpack.c.bf16 %v651, %v650
      %v680 = vpack.c.bf16 %v653, %v652
      %v681 = vpack.c.bf16 %v655, %v654
      %v682 = vpack.c.bf16 %v657, %v656
      %v683 = vpack.c.bf16 %v659, %v658
      %v684 = vpack.c.bf16 %v661, %v660
      %v685 = vpack.c.bf16 %v663, %v662
      %v686 = vpack.c.bf16 %v665, %v664
      %v687 = vpack.c.bf16 %v667, %v666
      %v688 = vpack.c.bf16 %v669, %v668
      %v689 = vpack.c.bf16 %v671, %v670
      %v690 = vpack.c.bf16 %v673, %v672
      %v691 = vpack.c.bf16 %v675, %v674
      %v692 = vld [vmem:[%s3] sm:$0xf]
      %v693 = vld [vmem:[%s3 + $0x4] sm:$0xf]
      %v694 = vld [vmem:[%s3 + $0x8] sm:$0xf]
      %v695 = vld [vmem:[%s3 + $0xc] sm:$0xf]
      %v696 = vld [vmem:[%s3 + $0x10] sm:$0xf]
      %v697 = vld [vmem:[%s3 + $0x14] sm:$0xf]
      %v698 = vld [vmem:[%s3 + $0x18] sm:$0xf]
      %v699 = vld [vmem:[%s3 + $0x1c] sm:$0xf]
      %v700 = vld [vmem:[%s3 + $0x20] sm:$0xf]
      %v701 = vld [vmem:[%s3 + $0x24] sm:$0xf]
      %v702 = vld [vmem:[%s3 + $0x28] sm:$0xf]
      %v703 = vld [vmem:[%s3 + $0x2c] sm:$0xf]
      %v704 = vld [vmem:[%s3 + $0x30] sm:$0xf]
      %v705 = vld [vmem:[%s3 + $0x34] sm:$0xf]
      %v706 = vld [vmem:[%s3 + $0x38] sm:$0xf]
      %v707 = vld [vmem:[%s3 + $0x3c] sm:$0xf]
      %v708 = vld [vmem:[%s4] sm:$0x1]
      %v710 = vlaneseq
      %v711 = vshrl.u32 %v710, 7
      %v712 = vsub.s32 0, %v711
      %v713 = vrot.slane %v708, %v712
      %v731 = vunpack.c.l.b16 %v692
      %v732 = vunpack.c.l.b16 %v693
      %v733 = vunpack.c.l.b16 %v694
      %v734 = vunpack.c.l.b16 %v695
      %v735 = vunpack.c.l.b16 %v696
      %v736 = vunpack.c.l.b16 %v697
      %v737 = vunpack.c.l.b16 %v698
      %v738 = vunpack.c.l.b16 %v699
      %v739 = vunpack.c.l.b16 %v700
      %v740 = vunpack.c.l.b16 %v701
      %v741 = vunpack.c.l.b16 %v702
      %v742 = vunpack.c.l.b16 %v703
      %v743 = vunpack.c.l.b16 %v704
      %v744 = vunpack.c.l.b16 %v705
      %v745 = vunpack.c.l.b16 %v706
      %v746 = vunpack.c.l.b16 %v707
      %v747 = vpack.c.b16 %v732, %v731
      %v748 = vpack.c.b16 %v734, %v733
      %v749 = vpack.c.b16 %v736, %v735
      %v750 = vpack.c.b16 %v738, %v737
      %v751 = vpack.c.b16 %v740, %v739
      %v752 = vpack.c.b16 %v742, %v741
      %v753 = vpack.c.b16 %v744, %v743
      %v754 = vpack.c.b16 %v746, %v745
      %763 = vmatprep.subr.bf16.mxu0 0
      %764 = vmatpush1.bf16.msra.mxu0 %v754
      %765 = vmatprep.subr.bf16.mxu0 0
      %766 = vmatpush1.bf16.msra.mxu0 %v753
      %767 = vmatprep.subr.bf16.mxu0 0
      %768 = vmatpush1.bf16.msra.mxu0 %v752
      %769 = vmatprep.subr.bf16.mxu0 0
      %770 = vmatpush1.bf16.msra.mxu0 %v751
      %771 = vmatprep.subr.bf16.mxu0 0
      %772 = vmatpush1.bf16.msra.mxu0 %v750
      %773 = vmatprep.subr.bf16.mxu0 0
      %774 = vmatpush1.bf16.msra.mxu0 %v749
      %775 = vmatprep.subr.bf16.mxu0 0
      %776 = vmatpush1.bf16.msra.mxu0 %v748
      %777 = vmatprep.subr.bf16.mxu0 0
      %778 = vmatpush1.bf16.msra.mxu0 %v747
      %779 = vmatprep.subr.bf16.mxu0 0
      %780 = vmatpush2.bf16.msra.mxu0 0
      %781 = vmatprep.subr.bf16.mxu0 0
      %782 = vmatpush2.bf16.msra.mxu0 0
      %783 = vmatprep.subr.bf16.mxu0 0
      %784 = vmatpush2.bf16.msra.mxu0 0
      %785 = vmatprep.subr.bf16.mxu0 0
      %786 = vmatpush2.bf16.msra.mxu0 0
      %787 = vmatprep.subr.bf16.mxu0 0
      %788 = vmatpush2.bf16.msra.mxu0 0
      %789 = vmatprep.subr.bf16.mxu0 0
      %790 = vmatpush2.bf16.msra.mxu0 0
      %791 = vmatprep.subr.bf16.mxu0 0
      %792 = vmatpush2.bf16.msra.mxu0 0
      %793 = vmatprep.subr.bf16.mxu0 0
      %794 = vmatpush2.bf16.msra.mxu0 0
      %795 = vmatprep.mubr.bf16.mxu0 0
      %796 = vmatmul.mubr.bf16.gmra.mxu0 %v676
      %v797 = vpop.f32.mrf.mxu0
      %v798 = vadd.f32 %v713, %v797
      %v799 = vpop.f32.mrf.mxu0
      %v800 = vpop.f32.mrf.mxu0
      %v801 = vadd.f32 %v713, %v800
      %v802 = vpop.f32.mrf.mxu0
      %803 = vmatprep.mubr.bf16.mxu0 0
      %804 = vmatmul.mubr.bf16.gmra.mxu0 %v677
      %v805 = vpop.f32.mrf.mxu0
      %v806 = vadd.f32 %v713, %v805
      %v807 = vpop.f32.mrf.mxu0
      %v808 = vpop.f32.mrf.mxu0
      %v809 = vadd.f32 %v713, %v808
      %v810 = vpop.f32.mrf.mxu0
      %811 = vmatprep.mubr.bf16.mxu0 0
      %812 = vmatmul.mubr.bf16.gmra.mxu0 %v678
      %v813 = vpop.f32.mrf.mxu0
      %v814 = vadd.f32 %v713, %v813
      %v815 = vpop.f32.mrf.mxu0
      %v816 = vpop.f32.mrf.mxu0
      %v817 = vadd.f32 %v713, %v816
      %v818 = vpop.f32.mrf.mxu0
      %819 = vmatprep.mubr.bf16.mxu0 0
      %820 = vmatmul.mubr.bf16.gmra.mxu0 %v679
      %v821 = vpop.f32.mrf.mxu0
      %v822 = vadd.f32 %v713, %v821
      %v823 = vpop.f32.mrf.mxu0
      %v824 = vpop.f32.mrf.mxu0
      %v825 = vadd.f32 %v713, %v824
      %v826 = vpop.f32.mrf.mxu0
      %827 = vmatprep.mubr.bf16.mxu0 0
      %828 = vmatmul.mubr.bf16.gmra.mxu0 %v680
      %v829 = vpop.f32.mrf.mxu0
      %v830 = vadd.f32 %v713, %v829
      %v831 = vpop.f32.mrf.mxu0
      %v832 = vpop.f32.mrf.mxu0
      %v833 = vadd.f32 %v713, %v832
      %v834 = vpop.f32.mrf.mxu0
      %835 = vmatprep.mubr.bf16.mxu0 0
      %836 = vmatmul.mubr.bf16.gmra.mxu0 %v681
      %v837 = vpop.f32.mrf.mxu0
      %v838 = vadd.f32 %v713, %v837
      %v839 = vpop.f32.mrf.mxu0
      %v840 = vpop.f32.mrf.mxu0
      %v841 = vadd.f32 %v713, %v840
      %v842 = vpop.f32.mrf.mxu0
      %843 = vmatprep.mubr.bf16.mxu0 0
      %844 = vmatmul.mubr.bf16.gmra.mxu0 %v682
      %v845 = vpop.f32.mrf.mxu0
      %v846 = vadd.f32 %v713, %v845
      %v847 = vpop.f32.mrf.mxu0
      %v848 = vpop.f32.mrf.mxu0
      %v849 = vadd.f32 %v713, %v848
      %v850 = vpop.f32.mrf.mxu0
      %851 = vmatprep.mubr.bf16.mxu0 0
      %852 = vmatmul.mubr.bf16.gmra.mxu0 %v683
      %v853 = vpop.f32.mrf.mxu0
      %v854 = vadd.f32 %v713, %v853
      %v855 = vpop.f32.mrf.mxu0
      %v856 = vpop.f32.mrf.mxu0
      %v857 = vadd.f32 %v713, %v856
      %v858 = vpop.f32.mrf.mxu0
      %859 = vmatprep.mubr.bf16.mxu0 0
      %860 = vmatmul.mubr.bf16.gmra.mxu0 %v684
      %v861 = vpop.f32.mrf.mxu0
      %v862 = vadd.f32 %v713, %v861
      %v863 = vpop.f32.mrf.mxu0
      %v864 = vpop.f32.mrf.mxu0
      %v865 = vadd.f32 %v713, %v864
      %v866 = vpop.f32.mrf.mxu0
      %867 = vmatprep.mubr.bf16.mxu0 0
      %868 = vmatmul.mubr.bf16.gmra.mxu0 %v685
      %v869 = vpop.f32.mrf.mxu0
      %v870 = vadd.f32 %v713, %v869
      %v871 = vpop.f32.mrf.mxu0
      %v872 = vpop.f32.mrf.mxu0
      %v873 = vadd.f32 %v713, %v872
      %v874 = vpop.f32.mrf.mxu0
      %875 = vmatprep.mubr.bf16.mxu0 0
      %876 = vmatmul.mubr.bf16.gmra.mxu0 %v686
      %v877 = vpop.f32.mrf.mxu0
      %v878 = vadd.f32 %v713, %v877
      %v879 = vpop.f32.mrf.mxu0
      %v880 = vpop.f32.mrf.mxu0
      %v881 = vadd.f32 %v713, %v880
      %v882 = vpop.f32.mrf.mxu0
      %883 = vmatprep.mubr.bf16.mxu0 0
      %884 = vmatmul.mubr.bf16.gmra.mxu0 %v687
      %v885 = vpop.f32.mrf.mxu0
      %v886 = vadd.f32 %v713, %v885
      %v887 = vpop.f32.mrf.mxu0
      %v888 = vpop.f32.mrf.mxu0
      %v889 = vadd.f32 %v713, %v888
      %v890 = vpop.f32.mrf.mxu0
      %891 = vmatprep.mubr.bf16.mxu0 0
      %892 = vmatmul.mubr.bf16.gmra.mxu0 %v688
      %v893 = vpop.f32.mrf.mxu0
      %v894 = vadd.f32 %v713, %v893
      %v895 = vpop.f32.mrf.mxu0
      %v896 = vpop.f32.mrf.mxu0
      %v897 = vadd.f32 %v713, %v896
      %v898 = vpop.f32.mrf.mxu0
      %899 = vmatprep.mubr.bf16.mxu0 0
      %900 = vmatmul.mubr.bf16.gmra.mxu0 %v689
      %v901 = vpop.f32.mrf.mxu0
      %v902 = vadd.f32 %v713, %v901
      %v903 = vpop.f32.mrf.mxu0
      %v904 = vpop.f32.mrf.mxu0
      %v905 = vadd.f32 %v713, %v904
      %v906 = vpop.f32.mrf.mxu0
      %907 = vmatprep.mubr.bf16.mxu0 0
      %908 = vmatmul.mubr.bf16.gmra.mxu0 %v690
      %v909 = vpop.f32.mrf.mxu0
      %v910 = vadd.f32 %v713, %v909
      %v911 = vpop.f32.mrf.mxu0
      %v912 = vpop.f32.mrf.mxu0
      %v913 = vadd.f32 %v713, %v912
      %v914 = vpop.f32.mrf.mxu0
      %915 = vmatprep.mubr.bf16.mxu0 0
      %916 = vmatmul.mubr.bf16.gmra.mxu0 %v691
      %v917 = vpop.f32.mrf.mxu0
      %v918 = vadd.f32 %v713, %v917
      %v919 = vpop.f32.mrf.mxu0
      %v920 = vpop.f32.mrf.mxu0
      %v921 = vadd.f32 %v713, %v920
      %v922 = vpop.f32.mrf.mxu0
      %923 = vdwg.mxu0
      %vm924 = vcmp.ge.f32.partialorder %v798, 0.0
      %vm925 = vcmp.ge.f32.partialorder %v801, 0.0
      %vm926 = vcmp.ge.f32.partialorder %v806, 0.0
      %vm927 = vcmp.ge.f32.partialorder %v809, 0.0
      %vm928 = vcmp.ge.f32.partialorder %v814, 0.0
      %vm929 = vcmp.ge.f32.partialorder %v817, 0.0
      %vm930 = vcmp.ge.f32.partialorder %v822, 0.0
      %vm931 = vcmp.ge.f32.partialorder %v825, 0.0
      %vm932 = vcmp.ge.f32.partialorder %v830, 0.0
      %vm933 = vcmp.ge.f32.partialorder %v833, 0.0
      %vm934 = vcmp.ge.f32.partialorder %v838, 0.0
      %vm935 = vcmp.ge.f32.partialorder %v841, 0.0
      %vm936 = vcmp.ge.f32.partialorder %v846, 0.0
      %vm937 = vcmp.ge.f32.partialorder %v849, 0.0
      %vm938 = vcmp.ge.f32.partialorder %v854, 0.0
      %vm939 = vcmp.ge.f32.partialorder %v857, 0.0
      %vm940 = vcmp.ge.f32.partialorder %v862, 0.0
      %vm941 = vcmp.ge.f32.partialorder %v865, 0.0
      %vm942 = vcmp.ge.f32.partialorder %v870, 0.0
      %vm943 = vcmp.ge.f32.partialorder %v873, 0.0
      %vm944 = vcmp.ge.f32.partialorder %v878, 0.0
      %vm945 = vcmp.ge.f32.partialorder %v881, 0.0
      %vm946 = vcmp.ge.f32.partialorder %v886, 0.0
      %vm947 = vcmp.ge.f32.partialorder %v889, 0.0
      %vm948 = vcmp.ge.f32.partialorder %v894, 0.0
      %vm949 = vcmp.ge.f32.partialorder %v897, 0.0
      %vm950 = vcmp.ge.f32.partialorder %v902, 0.0
      %vm951 = vcmp.ge.f32.partialorder %v905, 0.0
      %vm952 = vcmp.ge.f32.partialorder %v910, 0.0
      %vm953 = vcmp.ge.f32.partialorder %v913, 0.0
      %vm954 = vcmp.ge.f32.partialorder %v918, 0.0
      %vm955 = vcmp.ge.f32.partialorder %v921, 0.0
      %v956 = vmul.f32 %v798, 0.1
      %v957 = vmul.f32 %v801, 0.1
      %v958 = vmul.f32 %v806, 0.1
      %v959 = vmul.f32 %v809, 0.1
      %v960 = vmul.f32 %v814, 0.1
      %v961 = vmul.f32 %v817, 0.1
      %v962 = vmul.f32 %v822, 0.1
      %v963 = vmul.f32 %v825, 0.1
      %v964 = vmul.f32 %v830, 0.1
      %v965 = vmul.f32 %v833, 0.1
      %v966 = vmul.f32 %v838, 0.1
      %v967 = vmul.f32 %v841, 0.1
      %v968 = vmul.f32 %v846, 0.1
      %v969 = vmul.f32 %v849, 0.1
      %v970 = vmul.f32 %v854, 0.1
      %v971 = vmul.f32 %v857, 0.1
      %v972 = vmul.f32 %v862, 0.1
      %v973 = vmul.f32 %v865, 0.1
      %v974 = vmul.f32 %v870, 0.1
      %v975 = vmul.f32 %v873, 0.1
      %v976 = vmul.f32 %v878, 0.1
      %v977 = vmul.f32 %v881, 0.1
      %v978 = vmul.f32 %v886, 0.1
      %v979 = vmul.f32 %v889, 0.1
      %v980 = vmul.f32 %v894, 0.1
      %v981 = vmul.f32 %v897, 0.1
      %v982 = vmul.f32 %v902, 0.1
      %v983 = vmul.f32 %v905, 0.1
      %v984 = vmul.f32 %v910, 0.1
      %v985 = vmul.f32 %v913, 0.1
      %v986 = vmul.f32 %v918, 0.1
      %v987 = vmul.f32 %v921, 0.1
      %v988 = vsel %vm924, %v798, %v956
      %v989 = vsel %vm925, %v801, %v957
      %v990 = vsel %vm926, %v806, %v958
      %v991 = vsel %vm927, %v809, %v959
      %v992 = vsel %vm928, %v814, %v960
      %v993 = vsel %vm929, %v817, %v961
      %v994 = vsel %vm930, %v822, %v962
      %v995 = vsel %vm931, %v825, %v963
      %v996 = vsel %vm932, %v830, %v964
      %v997 = vsel %vm933, %v833, %v965
      %v998 = vsel %vm934, %v838, %v966
      %v999 = vsel %vm935, %v841, %v967
      %v1000 = vsel %vm936, %v846, %v968
      %v1001 = vsel %vm937, %v849, %v969
      %v1002 = vsel %vm938, %v854, %v970
      %v1003 = vsel %vm939, %v857, %v971
      %v1004 = vsel %vm940, %v862, %v972
      %v1005 = vsel %vm941, %v865, %v973
      %v1006 = vsel %vm942, %v870, %v974
      %v1007 = vsel %vm943, %v873, %v975
      %v1008 = vsel %vm944, %v878, %v976
      %v1009 = vsel %vm945, %v881, %v977
      %v1010 = vsel %vm946, %v886, %v978
      %v1011 = vsel %vm947, %v889, %v979
      %v1012 = vsel %vm948, %v894, %v980
      %v1013 = vsel %vm949, %v897, %v981
      %v1014 = vsel %vm950, %v902, %v982
      %v1015 = vsel %vm951, %v905, %v983
      %v1016 = vsel %vm952, %v910, %v984
      %v1017 = vsel %vm953, %v913, %v985
      %v1018 = vsel %vm954, %v918, %v986
      %v1019 = vsel %vm955, %v921, %v987
      %v1020 = vpack.c.bf16 %v989, %v988
      %v1021 = vpack.c.bf16 %v991, %v990
      %v1022 = vpack.c.bf16 %v993, %v992
      %v1023 = vpack.c.bf16 %v995, %v994
      %v1024 = vpack.c.bf16 %v997, %v996
      %v1025 = vpack.c.bf16 %v999, %v998
      %v1026 = vpack.c.bf16 %v1001, %v1000
      %v1027 = vpack.c.bf16 %v1003, %v1002
      %v1028 = vpack.c.bf16 %v1005, %v1004
      %v1029 = vpack.c.bf16 %v1007, %v1006
      %v1030 = vpack.c.bf16 %v1009, %v1008
      %v1031 = vpack.c.bf16 %v1011, %v1010
      %v1032 = vpack.c.bf16 %v1013, %v1012
      %v1033 = vpack.c.bf16 %v1015, %v1014
      %v1034 = vpack.c.bf16 %v1017, %v1016
      %v1035 = vpack.c.bf16 %v1019, %v1018
      %v1036 = vld [vmem:[%s5] sm:$0xf]
      %v1037 = vld [vmem:[%s5 + $0x4] sm:$0xf]
      %v1038 = vld [vmem:[%s5 + $0x8] sm:$0xf]
      %v1039 = vld [vmem:[%s5 + $0xc] sm:$0xf]
      %v1040 = vld [vmem:[%s5 + $0x10] sm:$0xf]
      %v1041 = vld [vmem:[%s5 + $0x14] sm:$0xf]
      %v1042 = vld [vmem:[%s5 + $0x18] sm:$0xf]
      %v1043 = vld [vmem:[%s5 + $0x1c] sm:$0xf]
      %v1044 = vld [vmem:[%s5 + $0x20] sm:$0xf]
      %v1045 = vld [vmem:[%s5 + $0x24] sm:$0xf]
      %v1046 = vld [vmem:[%s5 + $0x28] sm:$0xf]
      %v1047 = vld [vmem:[%s5 + $0x2c] sm:$0xf]
      %v1048 = vld [vmem:[%s5 + $0x30] sm:$0xf]
      %v1049 = vld [vmem:[%s5 + $0x34] sm:$0xf]
      %v1050 = vld [vmem:[%s5 + $0x38] sm:$0xf]
      %v1051 = vld [vmem:[%s5 + $0x3c] sm:$0xf]
      %v1052 = vld [vmem:[%s6] sm:$0x1]
      %v1054 = vlaneseq
      %v1055 = vshrl.u32 %v1054, 7
      %v1056 = vsub.s32 0, %v1055
      %v1057 = vrot.slane %v1052, %v1056
      %v1075 = vunpack.c.l.b16 %v1036
      %v1076 = vunpack.c.l.b16 %v1037
      %v1077 = vunpack.c.l.b16 %v1038
      %v1078 = vunpack.c.l.b16 %v1039
      %v1079 = vunpack.c.l.b16 %v1040
      %v1080 = vunpack.c.l.b16 %v1041
      %v1081 = vunpack.c.l.b16 %v1042
      %v1082 = vunpack.c.l.b16 %v1043
      %v1083 = vunpack.c.l.b16 %v1044
      %v1084 = vunpack.c.l.b16 %v1045
      %v1085 = vunpack.c.l.b16 %v1046
      %v1086 = vunpack.c.l.b16 %v1047
      %v1087 = vunpack.c.l.b16 %v1048
      %v1088 = vunpack.c.l.b16 %v1049
      %v1089 = vunpack.c.l.b16 %v1050
      %v1090 = vunpack.c.l.b16 %v1051
      %v1091 = vpack.c.b16 %v1076, %v1075
      %v1092 = vpack.c.b16 %v1078, %v1077
      %v1093 = vpack.c.b16 %v1080, %v1079
      %v1094 = vpack.c.b16 %v1082, %v1081
      %v1095 = vpack.c.b16 %v1084, %v1083
      %v1096 = vpack.c.b16 %v1086, %v1085
      %v1097 = vpack.c.b16 %v1088, %v1087
      %v1098 = vpack.c.b16 %v1090, %v1089
      %1107 = vmatprep.subr.bf16.mxu0 0
      %1108 = vmatpush1.bf16.msra.mxu0 %v1098
      %1109 = vmatprep.subr.bf16.mxu0 0
      %1110 = vmatpush1.bf16.msra.mxu0 %v1097
      %1111 = vmatprep.subr.bf16.mxu0 0
      %1112 = vmatpush1.bf16.msra.mxu0 %v1096
      %1113 = vmatprep.subr.bf16.mxu0 0
      %1114 = vmatpush1.bf16.msra.mxu0 %v1095
      %1115 = vmatprep.subr.bf16.mxu0 0
      %1116 = vmatpush1.bf16.msra.mxu0 %v1094
      %1117 = vmatprep.subr.bf16.mxu0 0
      %1118 = vmatpush1.bf16.msra.mxu0 %v1093
      %1119 = vmatprep.subr.bf16.mxu0 0
      %1120 = vmatpush1.bf16.msra.mxu0 %v1092
      %1121 = vmatprep.subr.bf16.mxu0 0
      %1122 = vmatpush1.bf16.msra.mxu0 %v1091
      %1123 = vmatprep.subr.bf16.mxu0 0
      %1124 = vmatpush2.bf16.msra.mxu0 0
      %1125 = vmatprep.subr.bf16.mxu0 0
      %1126 = vmatpush2.bf16.msra.mxu0 0
      %1127 = vmatprep.subr.bf16.mxu0 0
      %1128 = vmatpush2.bf16.msra.mxu0 0
      %1129 = vmatprep.subr.bf16.mxu0 0
      %1130 = vmatpush2.bf16.msra.mxu0 0
      %1131 = vmatprep.subr.bf16.mxu0 0
      %1132 = vmatpush2.bf16.msra.mxu0 0
      %1133 = vmatprep.subr.bf16.mxu0 0
      %1134 = vmatpush2.bf16.msra.mxu0 0
      %1135 = vmatprep.subr.bf16.mxu0 0
      %1136 = vmatpush2.bf16.msra.mxu0 0
      %1137 = vmatprep.subr.bf16.mxu0 0
      %1138 = vmatpush2.bf16.msra.mxu0 0
      %1139 = vmatprep.mubr.bf16.mxu0 0
      %1140 = vmatmul.mubr.bf16.gmra.mxu0 %v1020
      %v1141 = vpop.f32.mrf.mxu0
      %v1142 = vadd.f32 %v1057, %v1141
      %v1143 = vpop.f32.mrf.mxu0
      %v1144 = vpop.f32.mrf.mxu0
      %v1145 = vadd.f32 %v1057, %v1144
      %v1146 = vpop.f32.mrf.mxu0
      %1147 = vmatprep.mubr.bf16.mxu0 0
      %1148 = vmatmul.mubr.bf16.gmra.mxu0 %v1021
      %v1149 = vpop.f32.mrf.mxu0
      %v1150 = vadd.f32 %v1057, %v1149
      %v1151 = vpop.f32.mrf.mxu0
      %v1152 = vpop.f32.mrf.mxu0
      %v1153 = vadd.f32 %v1057, %v1152
      %v1154 = vpop.f32.mrf.mxu0
      %1155 = vmatprep.mubr.bf16.mxu0 0
      %1156 = vmatmul.mubr.bf16.gmra.mxu0 %v1022
      %v1157 = vpop.f32.mrf.mxu0
      %v1158 = vadd.f32 %v1057, %v1157
      %v1159 = vpop.f32.mrf.mxu0
      %v1160 = vpop.f32.mrf.mxu0
      %v1161 = vadd.f32 %v1057, %v1160
      %v1162 = vpop.f32.mrf.mxu0
      %1163 = vmatprep.mubr.bf16.mxu0 0
      %1164 = vmatmul.mubr.bf16.gmra.mxu0 %v1023
      %v1165 = vpop.f32.mrf.mxu0
      %v1166 = vadd.f32 %v1057, %v1165
      %v1167 = vpop.f32.mrf.mxu0
      %v1168 = vpop.f32.mrf.mxu0
      %v1169 = vadd.f32 %v1057, %v1168
      %v1170 = vpop.f32.mrf.mxu0
      %1171 = vmatprep.mubr.bf16.mxu0 0
      %1172 = vmatmul.mubr.bf16.gmra.mxu0 %v1024
      %v1173 = vpop.f32.mrf.mxu0
      %v1174 = vadd.f32 %v1057, %v1173
      %v1175 = vpop.f32.mrf.mxu0
      %v1176 = vpop.f32.mrf.mxu0
      %v1177 = vadd.f32 %v1057, %v1176
      %v1178 = vpop.f32.mrf.mxu0
      %1179 = vmatprep.mubr.bf16.mxu0 0
      %1180 = vmatmul.mubr.bf16.gmra.mxu0 %v1025
      %v1181 = vpop.f32.mrf.mxu0
      %v1182 = vadd.f32 %v1057, %v1181
      %v1183 = vpop.f32.mrf.mxu0
      %v1184 = vpop.f32.mrf.mxu0
      %v1185 = vadd.f32 %v1057, %v1184
      %v1186 = vpop.f32.mrf.mxu0
      %1187 = vmatprep.mubr.bf16.mxu0 0
      %1188 = vmatmul.mubr.bf16.gmra.mxu0 %v1026
      %v1189 = vpop.f32.mrf.mxu0
      %v1190 = vadd.f32 %v1057, %v1189
      %v1191 = vpop.f32.mrf.mxu0
      %v1192 = vpop.f32.mrf.mxu0
      %v1193 = vadd.f32 %v1057, %v1192
      %v1194 = vpop.f32.mrf.mxu0
      %1195 = vmatprep.mubr.bf16.mxu0 0
      %1196 = vmatmul.mubr.bf16.gmra.mxu0 %v1027
      %v1197 = vpop.f32.mrf.mxu0
      %v1198 = vadd.f32 %v1057, %v1197
      %v1199 = vpop.f32.mrf.mxu0
      %v1200 = vpop.f32.mrf.mxu0
      %v1201 = vadd.f32 %v1057, %v1200
      %v1202 = vpop.f32.mrf.mxu0
      %1203 = vmatprep.mubr.bf16.mxu0 0
      %1204 = vmatmul.mubr.bf16.gmra.mxu0 %v1028
      %v1205 = vpop.f32.mrf.mxu0
      %v1206 = vadd.f32 %v1057, %v1205
      %v1207 = vpop.f32.mrf.mxu0
      %v1208 = vpop.f32.mrf.mxu0
      %v1209 = vadd.f32 %v1057, %v1208
      %v1210 = vpop.f32.mrf.mxu0
      %1211 = vmatprep.mubr.bf16.mxu0 0
      %1212 = vmatmul.mubr.bf16.gmra.mxu0 %v1029
      %v1213 = vpop.f32.mrf.mxu0
      %v1214 = vadd.f32 %v1057, %v1213
      %v1215 = vpop.f32.mrf.mxu0
      %v1216 = vpop.f32.mrf.mxu0
      %v1217 = vadd.f32 %v1057, %v1216
      %v1218 = vpop.f32.mrf.mxu0
      %1219 = vmatprep.mubr.bf16.mxu0 0
      %1220 = vmatmul.mubr.bf16.gmra.mxu0 %v1030
      %v1221 = vpop.f32.mrf.mxu0
      %v1222 = vadd.f32 %v1057, %v1221
      %v1223 = vpop.f32.mrf.mxu0
      %v1224 = vpop.f32.mrf.mxu0
      %v1225 = vadd.f32 %v1057, %v1224
      %v1226 = vpop.f32.mrf.mxu0
      %1227 = vmatprep.mubr.bf16.mxu0 0
      %1228 = vmatmul.mubr.bf16.gmra.mxu0 %v1031
      %v1229 = vpop.f32.mrf.mxu0
      %v1230 = vadd.f32 %v1057, %v1229
      %v1231 = vpop.f32.mrf.mxu0
      %v1232 = vpop.f32.mrf.mxu0
      %v1233 = vadd.f32 %v1057, %v1232
      %v1234 = vpop.f32.mrf.mxu0
      %1235 = vmatprep.mubr.bf16.mxu0 0
      %1236 = vmatmul.mubr.bf16.gmra.mxu0 %v1032
      %v1237 = vpop.f32.mrf.mxu0
      %v1238 = vadd.f32 %v1057, %v1237
      %v1239 = vpop.f32.mrf.mxu0
      %v1240 = vpop.f32.mrf.mxu0
      %v1241 = vadd.f32 %v1057, %v1240
      %v1242 = vpop.f32.mrf.mxu0
      %1243 = vmatprep.mubr.bf16.mxu0 0
      %1244 = vmatmul.mubr.bf16.gmra.mxu0 %v1033
      %v1245 = vpop.f32.mrf.mxu0
      %v1246 = vadd.f32 %v1057, %v1245
      %v1247 = vpop.f32.mrf.mxu0
      %v1248 = vpop.f32.mrf.mxu0
      %v1249 = vadd.f32 %v1057, %v1248
      %v1250 = vpop.f32.mrf.mxu0
      %1251 = vmatprep.mubr.bf16.mxu0 0
      %1252 = vmatmul.mubr.bf16.gmra.mxu0 %v1034
      %v1253 = vpop.f32.mrf.mxu0
      %v1254 = vadd.f32 %v1057, %v1253
      %v1255 = vpop.f32.mrf.mxu0
      %v1256 = vpop.f32.mrf.mxu0
      %v1257 = vadd.f32 %v1057, %v1256
      %v1258 = vpop.f32.mrf.mxu0
      %1259 = vmatprep.mubr.bf16.mxu0 0
      %1260 = vmatmul.mubr.bf16.gmra.mxu0 %v1035
      %v1261 = vpop.f32.mrf.mxu0
      %v1262 = vadd.f32 %v1057, %v1261
      %v1263 = vpop.f32.mrf.mxu0
      %v1264 = vpop.f32.mrf.mxu0
      %v1265 = vadd.f32 %v1057, %v1264
      %v1266 = vpop.f32.mrf.mxu0
      %1267 = vdwg.mxu0
      %1268 = vst [vmem:[%s280] sm:$0xff] %v1142
      %1269 = vst [vmem:[%s280 + $0x8] sm:$0xff] %v1145
      %1270 = vst [vmem:[%s280 + $0x10] sm:$0xff] %v1150
      %1271 = vst [vmem:[%s280 + $0x18] sm:$0xff] %v1153
      %1272 = vst [vmem:[%s280 + $0x20] sm:$0xff] %v1158
      %1273 = vst [vmem:[%s280 + $0x28] sm:$0xff] %v1161
      %1274 = vst [vmem:[%s280 + $0x30] sm:$0xff] %v1166
      %1275 = vst [vmem:[%s280 + $0x38] sm:$0xff] %v1169
      %1276 = vst [vmem:[%s280 + $0x40] sm:$0xff] %v1174
      %1277 = vst [vmem:[%s280 + $0x48] sm:$0xff] %v1177
      %1278 = vst [vmem:[%s280 + $0x50] sm:$0xff] %v1182
      %1279 = vst [vmem:[%s280 + $0x58] sm:$0xff] %v1185
      %1280 = vst [vmem:[%s280 + $0x60] sm:$0xff] %v1190
      %1281 = vst [vmem:[%s280 + $0x68] sm:$0xff] %v1193
      %1282 = vst [vmem:[%s280 + $0x70] sm:$0xff] %v1198
      %1283 = vst [vmem:[%s280 + $0x78] sm:$0xff] %v1201
      %1284 = vst [vmem:[%s280 + $0x80] sm:$0xff] %v1206
      %1285 = vst [vmem:[%s280 + $0x88] sm:$0xff] %v1209
      %1286 = vst [vmem:[%s280 + $0x90] sm:$0xff] %v1214
      %1287 = vst [vmem:[%s280 + $0x98] sm:$0xff] %v1217
      %1288 = vst [vmem:[%s280 + $0xa0] sm:$0xff] %v1222
      %1289 = vst [vmem:[%s280 + $0xa8] sm:$0xff] %v1225
      %1290 = vst [vmem:[%s280 + $0xb0] sm:$0xff] %v1230
      %1291 = vst [vmem:[%s280 + $0xb8] sm:$0xff] %v1233
      %1292 = vst [vmem:[%s280 + $0xc0] sm:$0xff] %v1238
      %1293 = vst [vmem:[%s280 + $0xc8] sm:$0xff] %v1241
      %1294 = vst [vmem:[%s280 + $0xd0] sm:$0xff] %v1246
      %1295 = vst [vmem:[%s280 + $0xd8] sm:$0xff] %v1249
      %1296 = vst [vmem:[%s280 + $0xe0] sm:$0xff] %v1254
      %1297 = vst [vmem:[%s280 + $0xe8] sm:$0xff] %v1257
      %1298 = vst [vmem:[%s280 + $0xf0] sm:$0xff] %v1262
      %1299 = vst [vmem:[%s280 + $0xf8] sm:$0xff] %v1265
      %s1300 = smul.u32 32, %s18
      %p1301 = scmp.lt.s32.totalorder %s1300, 63
      %s1302 = scalar_select %p1301, %s1300, 63
      %s1303 = smul.addr %s1302, 8
      %s1304 = scalar_lea.vmem %s7, %s1303
      // Predicated region
      $region49: #{mlp_forward.1} parent=47 // pred_check
        %p1305 = pneg %p188
      $region50: #{mlp_forward.1} parent=47 // pred_check_branch
        %1307 = sbr.rel (%p1305) target = $region52
      $region51: #{mlp_forward.1} parent=47 // pred_region
        %s1308 = smul.u32 32, %s18
      $region52: #{mlp_forward.1} parent=47 // pred_fallthru
        _
    $region48: #{mlp_forward.1} parent=5 // pred_fallthru
      _
    %p1309 = scmp.le.s32.totalorder 2, %s13
    // Predicated region
    $region53: #{mlp_forward.1} parent=5 // pred_check
      %p1310 = pneg %p1309
    $region54: #{mlp_forward.1} parent=5 // pred_check_branch
      %1312 = sbr.rel (%p1310) target = $region56
    $region55: #{mlp_forward.1} parent=5 // pred_region
      %s1313 = ssub.s32 %s13, 2
      // Predicated region
      $region57: #{mlp_forward.1} parent=55 // pred_check
        %p1314 = pneg %p194
      $region58: #{mlp_forward.1} parent=55 // pred_check_branch
        %1316 = sbr.rel (%p1314) target = $region60
      $region59: #{mlp_forward.1} parent=55 // pred_region
        %s1317 = smul.u32 32, %s19
        %p1318 = scmp.lt.s32.totalorder %s1317, 63
        %s1319 = scalar_select %p1318, %s1317, 63
        %s1320 = smul.addr %s1319, 8
        %s1321 = scalar_lea.vmem %s7, %s1320
      $region60: #{mlp_forward.1} parent=55 // pred_fallthru
        _
    $region56: #{mlp_forward.1} parent=5 // pred_fallthru
      _
  $region6: #{mlp_forward.1} parent=0 // loop_footer
    %s17 = sadd.s32 1, %s13
  $region7: #{mlp_forward.1} parent=0 // loop_footer_branch
    %12 = sbr.rel target = $region3
  $region8: #{mlp_forward.1} parent=0 // loop_exit
    _

</llo_original>
